<compile_context>
chip_gen: v6e
topology: v6e:2x2x1
jax: 0.10.0
libtpu: 0.0.40
codegen_flags: <defaults>
</compile_context>

<pallas_src>
import functools

import jax
import jax.numpy as jnp
from jax.experimental import pallas as pl
from jax.experimental.pallas import tpu as pltpu

LEAKY_SLOPE = 0.1   # CBL (Conv-BN-LeakyReLU) convention
BN_EPS = 1e-5


# ----------------------------------------------------------------------------
# pltpu.roll direction probe
# ----------------------------------------------------------------------------
# The conv needs shifted[i] = x[i + off] (wrapped entries are masked away).
# To be robust against the rotate-direction convention of pltpu.roll we probe
# it once on device and bake the sign into the fused kernel as a static int.
def _probe_roll_sign():
    def _kern(x_ref, o_ref):
        o_ref[...] = pltpu.roll(x_ref[...], 1, 1)

    x = jnp.broadcast_to(jnp.arange(128, dtype=jnp.float32), (8, 128))
    y = pl.pallas_call(
        _kern, out_shape=jax.ShapeDtypeStruct((8, 128), jnp.float32))(x)
    v = float(y[0, 64])
    if v == 63.0:     # numpy convention: roll(x, s)[i] == x[i - s]
        return -1
    if v == 65.0:     # opposite convention: roll(x, s)[i] == x[i + s]
        return 1
    return -1


# ----------------------------------------------------------------------------
# Fused Pallas kernel
# ----------------------------------------------------------------------------
def _denoiser1_kernel(x0_ref, mask_ref,
                      wf1_ref, wf2_ref, wb1_ref, wb2_ref,
                      bf1_ref, bf2_ref, bb1_ref, bb2_ref,
                      tau_ref,
                      xout_ref, loss_ref,
                      cat_ref,
                      *, W, M, roll_sign):
    """Fused denoiser1 forward for one slab of NG images.

    Activations are (CH, L) f32 values: channels on sublanes, flattened
    (image, h, w) index on lanes (L = M or 2*M).  A 3x3 conv is 9 lane-rolls
    of the input, masked at image/row boundaries, each fed to an MXU matmul
    with the corresponding (CH, CH) weight tap.
    """

    def conv3x3(a, w_ref, b_ref, act):
        L = a.shape[1]
        acc = None
        for t in range(9):
            dy, dx = t // 3, t % 3
            off = (dy - 1) * W + (dx - 1)
            if off == 0:
                shifted = a
            else:
                shifted = pltpu.roll(a, (roll_sign * off) % L, 1)
            msk = mask_ref[t, :, 0:L]                        # (1, L) 0/1 mask
            tap = jnp.dot(w_ref[t], shifted * msk,
                          preferred_element_type=jnp.float32)
            acc = tap if acc is None else acc + tap
        acc = acc + b_ref[...]                               # (CH, 1) bias
        if act:
            acc = jnp.where(acc >= 0.0, acc, LEAKY_SLOPE * acc)
        return acc

    x0 = x0_ref[0]                                           # (CH, M)

    h = conv3x3(x0, wf1_ref, bf1_ref, act=True)              # CBL_f1
    x = conv3x3(h, wf2_ref, bf2_ref, act=False)              # CBL_f2

    tau = tau_ref[0]                                         # SMEM scalar
    sgn = jnp.where(x > 0.0, 1.0, jnp.where(x < 0.0, -1.0, 0.0))
    x_th = sgn * jnp.maximum(jnp.abs(x) - tau, 0.0)          # SoftThreshold

    # Both branches share CBL_B1/CBL_B2 weights -> batch them along lanes.
    cat_ref[:, 0:M] = x_th
    cat_ref[:, M:2 * M] = x
    xx = cat_ref[...]                                        # (CH, 2M)

    y = conv3x3(xx, wb1_ref, bb1_ref, act=True)              # CBL_B1
    z = conv3x3(y, wb2_ref, bb2_ref, act=False)              # CBL_B2

    cat_ref[...] = z
    xout_ref[0] = cat_ref[0:1, 0:M]                          # denoised branch
    loss_ref[0] = cat_ref[0:1, M:2 * M] - x0_ref[0, 0:1, :]  # x_back - xin


# ----------------------------------------------------------------------------
# Wrapper (pure layout glue: channel padding, per-tap weight transpose, masks)
# ----------------------------------------------------------------------------
def _prep_conv_params(w, b, CH):
    """(3,3,cin,cout) HWIO weights -> (9, CH, CH) per-tap transposed +
    zero-padded weights; bias -> (CH, 1)."""
    cin, cout = w.shape[2], w.shape[3]
    wt = jnp.transpose(w, (0, 1, 3, 2)).reshape(9, cout, cin)
    wt = jnp.pad(wt, ((0, 0), (0, CH - cout), (0, CH - cin)))
    bt = jnp.pad(b, (0, CH - cout)).reshape(CH, 1)
    return wt.astype(jnp.float32), bt.astype(jnp.float32)


def _boundary_masks(H, W, L):
    """(9, 1, L) 0/1 masks: mask[t, 0, i] == 1 iff the 3x3 tap t reads an
    in-bounds source pixel at flattened destination index i."""
    idx = jnp.arange(L, dtype=jnp.int32)
    w_i = idx % W
    h_i = (idx // W) % H
    ones = jnp.ones((L,), jnp.float32)
    hmask = [(h_i >= 1).astype(jnp.float32), ones,
             (h_i <= H - 2).astype(jnp.float32)]
    wmask = [(w_i >= 1).astype(jnp.float32), ones,
             (w_i <= W - 2).astype(jnp.float32)]
    m = jnp.stack([hmask[dy] * wmask[dx] for dy in range(3) for dx in range(3)])
    return m[:, None, :]


def denoiser1_forward(params, xin_nchw, roll_sign=-1):
    B, C, H, W = xin_nchw.shape
    N = B * C
    fn = params["f1"][0].shape[-1]
    CH = max(8, ((fn + 7) // 8) * 8)      # channel/sublane padding

    # 2-way batch split -> both v7x TensorCores get work; no-op on v5e/v6e.
    G = 2 if (N % 2 == 0 and ((N // 2) * H * W) % 128 == 0) else 1
    NG = N // G
    M = NG * H * W
    if M % 128 != 0:
        raise ValueError("N*H*W per grid block must be a multiple of 128")

    # input (B,C,H,W) -> (G, CH, M); real data lives in channel-row 0.
    x0 = xin_nchw.astype(jnp.float32).reshape(G, 1, M)
    x0 = jnp.pad(x0, ((0, 0), (0, CH - 1), (0, 0)))

    masks = _boundary_masks(H, W, 2 * M)

    wf1, bf1 = _prep_conv_params(*params["f1"], CH)
    wf2, bf2 = _prep_conv_params(*params["f2"], CH)
    wb1, bb1 = _prep_conv_params(*params["B1"], CH)
    wb2, bb2 = _prep_conv_params(*params["B2"], CH)
    tau = params["tau"].astype(jnp.float32)

    kernel = functools.partial(_denoiser1_kernel, W=W, M=M, roll_sign=roll_sign)
    const3 = lambda g: (0, 0, 0)
    const2 = lambda g: (0, 0)
    w_spec = pl.BlockSpec((9, CH, CH), const3)
    b_spec = pl.BlockSpec((CH, 1), const2)

    # TODO(synk): for real image sizes tile M along the lane axis and set
    # pltpu.CompilerParams(vmem_limit_bytes=...) (v7x has only 64 MiB VMEM).
    x_out, loss = pl.pallas_call(
        kernel,
        out_shape=(jax.ShapeDtypeStruct((G, 1, M), jnp.float32),
                   jax.ShapeDtypeStruct((G, 1, M), jnp.float32)),
        grid_spec=pltpu.PrefetchScalarGridSpec(
            num_scalar_prefetch=0,
            grid=(G,),
            in_specs=[
                pl.BlockSpec((1, CH, M), lambda g: (g, 0, 0)),        # x0
                pl.BlockSpec((9, 1, 2 * M), const3),                  # masks
                w_spec, w_spec, w_spec, w_spec,                       # weights
                b_spec, b_spec, b_spec, b_spec,                       # biases
                pl.BlockSpec(memory_space=pltpu.MemorySpace.SMEM),    # tau
            ],
            out_specs=(
                pl.BlockSpec((1, 1, M), lambda g: (g, 0, 0)),
                pl.BlockSpec((1, 1, M), lambda g: (g, 0, 0)),
            ),
            scratch_shapes=[pltpu.VMEM((CH, 2 * M), jnp.float32)],
        ),
        compiler_params=pltpu.CompilerParams(
            dimension_semantics=("parallel",)),
    )(x0, masks, wf1, wf2, wb1, wb2, bf1, bf2, bb1, bb2, tau)

    x_out_nchw = x_out.reshape(B, C, H, W)
    symloss_nchw = loss.reshape(N, 1, H, W)
    return x_out_nchw, symloss_nchw


# ----------------------------------------------------------------------------
# Parameter init (deterministic, synthetic) + BN folding
# ----------------------------------------------------------------------------
def _fold_bn(w, b, gamma, beta, mean, var):
    scale = gamma / jnp.sqrt(var + BN_EPS)
    return w * scale[None, None, None, :], (b - mean) * scale + beta


def init_params(key, fn):
    def cbl_params(k, cin, cout):
        kw, kb, kg, kbe, km, kv = jax.random.split(k, 6)
        w = jax.random.normal(kw, (3, 3, cin, cout), jnp.float32) / jnp.sqrt(9.0 * cin)
        b = 0.01 * jax.random.normal(kb, (cout,), jnp.float32)
        gamma = 1.0 + 0.1 * jax.random.normal(kg, (cout,), jnp.float32)
        beta = 0.1 * jax.random.normal(kbe, (cout,), jnp.float32)
        mean = 0.1 * jax.random.normal(km, (cout,), jnp.float32)
        var = jnp.abs(1.0 + 0.1 * jax.random.normal(kv, (cout,), jnp.float32))
        return _fold_bn(w, b, gamma, beta, mean, var)

    k1, k2, k3, k4 = jax.random.split(key, 4)
    return {
        "f1": cbl_params(k1, 1, fn),
        "f2": cbl_params(k2, fn, fn),
        "B1": cbl_params(k3, fn, fn),
        "B2": cbl_params(k4, fn, 1),
        "tau": jnp.array([0.05], jnp.float32),   # SoftThreshold parameter
    }


# ----------------------------------------------------------------------------
# Pure-JAX reference (lax conv) for correctness check
# ----------------------------------------------------------------------------
def _ref_conv(x_nhwc, w, b, act):
    y = jax.lax.conv_general_dilated(
        x_nhwc, w, window_strides=(1, 1), padding="SAME",
        dimension_numbers=("NHWC", "HWIO", "NHWC"))
    y = y + b[None, None, None, :]
    return jnp.where(y >= 0, y, LEAKY_SLOPE * y) if act else y


def denoiser1_reference(params, xin_nchw):
    B, C, H, W = xin_nchw.shape
    x0 = jnp.transpose(xin_nchw.reshape(B * C, 1, H, W), (0, 2, 3, 1))

    def cbl(x, name, act):
        w, b = params[name]
        return _ref_conv(x, w, b, act)

    x = cbl(cbl(x0, "f1", True), "f2", False)
    tau = params["tau"][0]
    x_th = jnp.sign(x) * jnp.maximum(jnp.abs(x) - tau, 0.0)
    x_out = cbl(cbl(x_th, "B1", True), "B2", False)
    x_back = cbl(cbl(x, "B1", True), "B2", False)
    loss = x_back - x0
    return (jnp.transpose(x_out, (0, 3, 1, 2)).reshape(B, C, H, W),
            jnp.transpose(loss, (0, 3, 1, 2)))


if __name__ == "__main__":
    B, C, H, W = 2, 4, 16, 16
    fn = 8

    key = jax.random.PRNGKey(0)
    k_x, k_p = jax.random.split(key)
    xin = jax.random.normal(k_x, (B, C, H, W), dtype=jnp.float32)
    params = init_params(k_p, fn)

    roll_sign = _probe_roll_sign()

    fwd = jax.jit(functools.partial(denoiser1_forward, roll_sign=roll_sign))
    x_out, stage_symloss = fwd(params, xin)
    jax.block_until_ready((x_out, stage_symloss))

    # mems list from the PyTorch module is CUDA bookkeeping only.
    # TODO(synk): torch.cuda.memory_reserved() has no TPU/Pallas equivalent.
    mems = ["0G"] * 6

    x_out_ref, symloss_ref = denoiser1_reference(params, xin)
    assert x_out.shape == (B, C, H, W)
    assert stage_symloss.shape == (B * C, 1, H, W)
    assert jnp.allclose(x_out, x_out_ref, atol=1e-3, rtol=1e-3)
    assert jnp.allclose(stage_symloss, symloss_ref, atol=1e-3, rtol=1e-3)

    print("KERNEL_OK")
</pallas_src>

<mosaic_0001>
module attributes {stable_mosaic.version = 11 : i64} {
  func.func @_kern(%arg0: memref<8x128xf32, #tpu.memory_space<vmem>>, %arg1: memref<8x128xf32, #tpu.memory_space<vmem>>) attributes {dimension_semantics = [], scalar_prefetch = 0 : i64, scratch_operands = 0 : i64, tpu.core_type = #tpu.core_type<tc>} {
    %c0 = arith.constant 0 : index
    %c0_0 = arith.constant 0 : index
    %0 = vector.load %arg0[%c0, %c0_0] : memref<8x128xf32, #tpu.memory_space<vmem>>, vector<8x128xf32>
    %c1_i32 = arith.constant 1 : i32
    %1 = tpu.dynamic_rotate %0 by %c1_i32 dim 1 : vector<8x128xf32>, i32 -> vector<8x128xf32>
    %c0_1 = arith.constant 0 : index
    %c0_2 = arith.constant 0 : index
    %2 = vector.load %arg1[%c0_1, %c0_2] : memref<8x128xf32, #tpu.memory_space<vmem>>, vector<8x128xf32>
    tpu.vector_store %arg1[%c0_1, %c0_2], %1 {strides = array<i32>} : memref<8x128xf32, #tpu.memory_space<vmem>>, vector<8x128xf32>,
    return
  }
}

</mosaic_0001>

<llo_original>
// kernel: tpu_custom_call.1
$region0: #{tpu_custom_call.1}
  #allocation0 [shape = 'u32[]', space=smem, size = 0x4, offset = 0x4, fixed_abs, tag = 'smem constant byte address 0x4 - core index']
  #allocation1 [shape = 'u32[144,128]{1,0:T(1,128)}', space=vmem, size = 0x12000, scoped, tag = 'internal scratch']
  %s0 = inlined_call_operand.hbm [shape: f32[8,128], index: 0, kind: input, shape index: {}]
  %s1 = inlined_call_operand.hbm [shape: f32[8,128], index: 1, kind: output, shape index: {}]
  %s2 = sld [smem:[#allocation0]]
  $region18: #{tpu_custom_call.1} parent=0
    _
  %s4 = ssub.s32 1, %s2
  %s5 = scalar_select 0, %s4, %s2
  $region1: #{tpu_custom_call.1} parent=0
    #allocation2 [shape = 'u8[4096]{0}', space=vmem, size = 0x1000, scoped, tag = 'input window, operand 0, single buffered']
    #allocation3 [shape = 's32[1]{0}', space=sflag, size = 0x4, scoped, tag = 'scoped memory for tpu_custom_call.1']
    #allocation4 [shape = 's32[1]{0}', space=sflag, size = 0x4, scoped, tag = 'scoped memory for tpu_custom_call.1']
    #allocation5 [shape = 'u8[4096]{0}', space=vmem, size = 0x1000, scoped, tag = 'output window, operand 0, single buffered']
    %6 = vsyncpa [#allocation3], 0
    %7 = vsyncpa [#allocation4], 0
    // Predicated region
    $region2: #{tpu_custom_call.1} parent=1 // pred_check
      _
    $region3: #{tpu_custom_call.1} parent=1 // pred_check_branch
      %9 = sbr.rel (0) target = $region5
    $region4: #{tpu_custom_call.1} parent=1 // pred_region
      %s11 = ssub.s32 128, 128
      %12 = vsyncadd [#allocation3], %s11
      %s14 = sshll.u32 [#allocation2], 4
      %s15 = int_to_ptr.vmem [resolvable:$true] %s14
      %17 = dma.hbm_to_vmem [thread:$0]  %s0, 128, %s15, [#allocation3]
    $region5: #{tpu_custom_call.1} parent=1 // pred_fallthru
      _
    // Predicated region
    $region6: #{tpu_custom_call.1} parent=1 // pred_check
      _
    $region7: #{tpu_custom_call.1} parent=1 // pred_check_branch
      %19 = sbr.rel (0) target = $region9
    $region8: #{tpu_custom_call.1} parent=1 // pred_region
      %20 = dma.done [#allocation3], 128
    $region9: #{tpu_custom_call.1} parent=1 // pred_fallthru
      _
    %v21 = vld [vmem:[#allocation2] sm:$0xff]
    %22 = vrot.lane.b32.xlu0 %v21, 1
    %v23 = vpop.permute.xlu0 %22
    %24 = vst [vmem:[#allocation5] sm:$0xff] %v23
    // Predicated region
    $region10: #{tpu_custom_call.1} parent=1 // pred_check
      _
    $region11: #{tpu_custom_call.1} parent=1 // pred_check_branch
      %26 = sbr.rel (0) target = $region13
    $region12: #{tpu_custom_call.1} parent=1 // pred_region
      %s28 = ssub.s32 128, 128
      %29 = vsyncadd [#allocation4], %s28
      %s31 = sshll.u32 [#allocation5], 4
      %s32 = int_to_ptr.vmem [resolvable:$true] %s31
      %34 = dma.vmem_to_hbm [thread:$0]  %s32, 128, %s1, [#allocation4]
    $region13: #{tpu_custom_call.1} parent=1 // pred_fallthru
      _
    // Predicated region
    $region14: #{tpu_custom_call.1} parent=1 // pred_check
      _
    $region15: #{tpu_custom_call.1} parent=1 // pred_check_branch
      %36 = sbr.rel (0) target = $region17
    $region16: #{tpu_custom_call.1} parent=1 // pred_region
      %37 = dma.done [#allocation4], 128
    $region17: #{tpu_custom_call.1} parent=1 // pred_fallthru
      _
    %38 = vsyncpa [#allocation3], 1
    %39 = vsyncpa [#allocation4], 1

</llo_original>
